<compile_context>
chip_gen: v6e
topology: v6e:2x2x1
jax: 0.10.0
libtpu: 0.0.40
codegen_flags: <defaults>
</compile_context>

<pallas_src>
import jax
import jax.numpy as jnp
from jax.experimental import pallas as pl
from jax.experimental.pallas import tpu as pltpu


def _round_up(x, m):
    return ((x + m - 1) // m) * m


def _vmem_capacity_bytes():
    try:
        cap = int(pltpu.get_tpu_info().vmem_capacity_bytes)
        if cap > 0:
            return cap
    except Exception:
        pass
    return 64 * 1024 * 1024  # conservative (v7x-sized) fallback


# --------------------------- kernels ---------------------------

def _mlp_kernel_resident(x_ref, w1_ref, w2_ref, s_ref, b_ref, o_ref):
    """Weights fully resident in VMEM; single grid axis over row tiles."""
    h = jnp.dot(x_ref[...].astype(w1_ref.dtype), w1_ref[...],
                preferred_element_type=jnp.float32)
    r = jnp.maximum(h, 0.0)
    a = s_ref[0, 0] * (r * r) + b_ref[0, 0]          # StarReLU in f32
    o_ref[...] = jnp.dot(a.astype(w2_ref.dtype), w2_ref[...],
                         preferred_element_type=jnp.float32).astype(o_ref.dtype)


def _mlp_kernel_tiled_acc(x_ref, w1_ref, w2_ref, s_ref, b_ref, o_ref, acc_ref):
    """Hidden-dim tiled reduction with an f32 VMEM accumulator (non-f32 out)."""
    k = pl.program_id(1)

    @pl.when(k == 0)
    def _():
        acc_ref[...] = jnp.zeros_like(acc_ref)

    h = jnp.dot(x_ref[...].astype(w1_ref.dtype), w1_ref[...],
                preferred_element_type=jnp.float32)
    r = jnp.maximum(h, 0.0)
    # StarReLU is elementwise per hidden unit and +bias distributes linearly
    # through fc2, so the hidden-dim decomposition is exact.
    a = s_ref[0, 0] * (r * r) + b_ref[0, 0]
    acc_ref[...] += jnp.dot(a.astype(w2_ref.dtype), w2_ref[...],
                            preferred_element_type=jnp.float32)

    @pl.when(k == pl.num_programs(1) - 1)
    def _():
        o_ref[...] = acc_ref[...].astype(o_ref.dtype)


def _mlp_kernel_tiled_f32out(x_ref, w1_ref, w2_ref, s_ref, b_ref, o_ref):
    """Hidden-dim tiled reduction accumulating directly into the f32 output."""
    k = pl.program_id(1)

    @pl.when(k == 0)
    def _():
        o_ref[...] = jnp.zeros_like(o_ref)

    h = jnp.dot(x_ref[...].astype(w1_ref.dtype), w1_ref[...],
                preferred_element_type=jnp.float32)
    r = jnp.maximum(h, 0.0)
    a = s_ref[0, 0] * (r * r) + b_ref[0, 0]
    o_ref[...] += jnp.dot(a.astype(w2_ref.dtype), w2_ref[...],
                          preferred_element_type=jnp.float32)


# ----------------------- tile selection ------------------------

def _resident_vmem_bytes(tm, D, Hp, bw_x, bw_w, bw_o):
    return (2 * tm * D * bw_x          # x block (double-buffered)
            + 2 * D * Hp * bw_w        # W1 (count 2 buffers, conservative)
            + 2 * Hp * D * bw_w        # W2
            + 2 * tm * D * bw_o        # out block
            + 2 * tm * Hp * 4)         # f32 hidden-activation temporaries


def _tiled_vmem_bytes(tm, th, D, bw_x, bw_w, bw_o, use_acc):
    return (2 * tm * D * bw_x
            + 2 * D * th * bw_w
            + 2 * th * D * bw_w
            + 2 * tm * D * bw_o
            + (tm * D * 4 if use_acc else 0)
            + 2 * tm * th * 4)


def _row_tile_options(R, block_rows):
    tm_cap = min(block_rows, R)
    if R >= 256:
        # Leave at least 2 row tiles so v7x's two TensorCores / megacore
        # sharding of the "parallel" axis both get work.
        tm_cap = min(tm_cap, max(128, _round_up(pl.cdiv(R, 2), 128)))
    opts = []
    for c in (1024, 512, 256, 128, 64, 32, 16, 8):
        t = min(c, tm_cap)
        if t > 0 and t not in opts:
            opts.append(t)
    return opts


# --------------------------- wrapper ---------------------------

def _mlp_rows(x2d, w1, w2, scale, bias, *, block_rows=512, force_path=None):
    """x2d: (R, D); w1: (D, Hp); w2: (Hp, D). Returns (R, D)."""
    R, D = x2d.shape
    Dw, Hp = w1.shape
    assert Dw == D and w2.shape == (Hp, D)
    assert Hp % 128 == 0, "hidden dim must be padded to a multiple of 128"

    bw_x = jnp.dtype(x2d.dtype).itemsize
    bw_w = jnp.dtype(w1.dtype).itemsize
    bw_o = bw_x
    out_dtype = x2d.dtype

    cap = _vmem_capacity_bytes()
    vmem_limit = min(int(cap * 0.85), cap - (4 << 20))
    tile_budget = int(cap * 0.70)

    s11 = jnp.asarray(scale, jnp.float32).reshape(1, 1)
    b11 = jnp.asarray(bias, jnp.float32).reshape(1, 1)

    cost = pl.CostEstimate(
        flops=int(4 * R * D * Hp),
        transcendentals=0,
        bytes_accessed=int(R * D * bw_x + 2 * D * Hp * bw_w + R * D * bw_o),
    )

    tm_opts = _row_tile_options(R, block_rows)

    # --- weight-resident path: weights DMA'd once, never re-streamed per tile.
    resident_tm = None
    for tm in tm_opts:
        if _resident_vmem_bytes(tm, D, Hp, bw_x, bw_w, bw_o) <= tile_budget:
            resident_tm = tm
            break
    use_resident = resident_tm is not None
    if force_path == "tiled":
        use_resident = False
    elif force_path == "resident":
        use_resident = True
        resident_tm = resident_tm or tm_opts[-1]

    if use_resident:
        tm = resident_tm
        grid = (pl.cdiv(R, tm),)
        return pl.pallas_call(
            _mlp_kernel_resident,
            out_shape=jax.ShapeDtypeStruct((R, D), out_dtype),
            grid_spec=pltpu.PrefetchScalarGridSpec(
                num_scalar_prefetch=0,
                grid=grid,
                in_specs=[
                    pl.BlockSpec((tm, D), lambda i: (i, 0)),    # x rows
                    pl.BlockSpec((D, Hp), lambda i: (0, 0)),    # W1 (resident)
                    pl.BlockSpec((Hp, D), lambda i: (0, 0)),    # W2 (resident)
                    pl.BlockSpec((1, 1), lambda i: (0, 0)),     # StarReLU scale
                    pl.BlockSpec((1, 1), lambda i: (0, 0)),     # StarReLU bias
                ],
                out_specs=pl.BlockSpec((tm, D), lambda i: (i, 0)),
            ),
            compiler_params=pltpu.CompilerParams(
                dimension_semantics=("parallel",),
                vmem_limit_bytes=vmem_limit,
            ),
            cost_estimate=cost,
        )(x2d, w1, w2, s11, b11)

    # --- hidden-dim tiled fallback (weights too large for VMEM residency).
    use_acc = out_dtype != jnp.float32
    choice = None
    for tm in tm_opts:
        for th in (512, 256, 128):
            if Hp % th != 0:
                continue
            if _tiled_vmem_bytes(tm, th, D, bw_x, bw_w, bw_o, use_acc) <= tile_budget:
                choice = (tm, th)
                break
        if choice is not None:
            break
    if choice is None:
        choice = (tm_opts[-1], 128)   # minimal tiles; always compiles
    tm, th = choice

    grid = (pl.cdiv(R, tm), Hp // th)
    kernel = _mlp_kernel_tiled_acc if use_acc else _mlp_kernel_tiled_f32out
    scratch = [pltpu.VMEM((tm, D), jnp.float32)] if use_acc else []

    return pl.pallas_call(
        kernel,
        out_shape=jax.ShapeDtypeStruct((R, D), out_dtype),
        grid_spec=pltpu.PrefetchScalarGridSpec(
            num_scalar_prefetch=0,
            grid=grid,
            in_specs=[
                pl.BlockSpec((tm, D), lambda i, k: (i, 0)),    # x rows
                pl.BlockSpec((D, th), lambda i, k: (0, k)),    # W1 hidden slice
                pl.BlockSpec((th, D), lambda i, k: (k, 0)),    # W2 hidden slice
                pl.BlockSpec((1, 1), lambda i, k: (0, 0)),     # StarReLU scale
                pl.BlockSpec((1, 1), lambda i, k: (0, 0)),     # StarReLU bias
            ],
            out_specs=pl.BlockSpec((tm, D), lambda i, k: (i, 0)),
            scratch_shapes=scratch,
        ),
        compiler_params=pltpu.CompilerParams(
            dimension_semantics=("parallel", "arbitrary"),
            vmem_limit_bytes=vmem_limit,
        ),
        cost_estimate=cost,
    )(x2d, w1, w2, s11, b11)


# ---------------------------- module ----------------------------

class MLP:
    """JAX/Pallas port of the PyTorch MLP(dim, mlp_ratio, act=StarReLU, bias=False)."""

    def __init__(self, dim, mlp_ratio=4, drop=0.0, bias=False, *,
                 key=None, compute_dtype=jnp.bfloat16, block_rows=512):
        assert not bias  # TODO(synk): Linear bias not implemented (module default is bias=False)
        assert drop == 0.0  # TODO(synk): dropout p>0 (training) not implemented; drop=0.0 forward is identity
        self.dim = int(dim)
        self.hidden = int(mlp_ratio * dim)
        self.hidden_padded = _round_up(self.hidden, 128)
        self.block_rows = block_rows

        if key is None:
            key = jax.random.PRNGKey(0)
        k1, k2 = jax.random.split(key)
        bound1 = 1.0 / (self.dim ** 0.5)
        bound2 = 1.0 / (self.hidden ** 0.5)
        w1 = jax.random.uniform(k1, (self.dim, self.hidden), jnp.float32,
                                minval=-bound1, maxval=bound1)
        w2 = jax.random.uniform(k2, (self.hidden, self.dim), jnp.float32,
                                minval=-bound2, maxval=bound2)
        pad = self.hidden_padded - self.hidden
        if pad:
            # Exact: padded hidden units give relu(0)^2 -> bias, which then
            # multiplies zero rows of W2 and contributes nothing.
            w1 = jnp.pad(w1, ((0, 0), (0, pad)))
            w2 = jnp.pad(w2, ((0, pad), (0, 0)))
        # bf16 weights: single-pass MXU matmuls, half the HBM/VMEM traffic.
        self.w1 = w1.astype(compute_dtype)
        self.w2 = w2.astype(compute_dtype)
        # StarReLU parameters (scale=1.0, bias=0.0 init, matching the module).
        self.scale = jnp.ones((1,), jnp.float32)
        self.bias = jnp.zeros((1,), jnp.float32)

    def __call__(self, x, *, force_path=None):
        orig_shape = x.shape
        assert orig_shape[-1] == self.dim
        x2d = x.reshape(-1, self.dim)
        y2d = _mlp_rows(x2d, self.w1, self.w2, self.scale, self.bias,
                        block_rows=self.block_rows, force_path=force_path)
        return y2d.reshape(orig_shape)


def _ref_mlp(x, w1, w2, scale, bias):
    xb = x.astype(w1.dtype)
    h = jnp.einsum("...d,dh->...h", xb, w1, preferred_element_type=jnp.float32)
    a = scale[0] * jnp.maximum(h, 0.0) ** 2 + bias[0]
    y = jnp.einsum("...h,hd->...d", a.astype(w2.dtype), w2,
                   preferred_element_type=jnp.float32)
    return y.astype(x.dtype)


if __name__ == "__main__":
    key = jax.random.PRNGKey(0)
    k_x, k_m = jax.random.split(key)

    dim = 32                              # hidden = 4 * 32 = 128
    x = jax.random.normal(k_x, (2, 16, 16, dim), dtype=jnp.float32)

    mlp = MLP(dim, mlp_ratio=4, key=k_m)
    ref = _ref_mlp(x, mlp.w1, mlp.w2, mlp.scale, mlp.bias)

    # Default (weight-resident) path.
    y = jax.block_until_ready(mlp(x))
    assert y.shape == x.shape
    assert jnp.allclose(y, ref, atol=5e-3, rtol=5e-3), float(jnp.max(jnp.abs(y - ref)))

    # Hidden-dim tiled fallback path (used when weights exceed the VMEM budget).
    y_t = jax.block_until_ready(mlp(x, force_path="tiled"))
    assert jnp.allclose(y_t, ref, atol=5e-3, rtol=5e-3), float(jnp.max(jnp.abs(y_t - ref)))

    # bf16 activations exercise the f32-scratch accumulator variant.
    x_bf = x.astype(jnp.bfloat16)
    y_bf = jax.block_until_ready(mlp(x_bf, force_path="tiled"))
    ref_bf = _ref_mlp(x_bf, mlp.w1, mlp.w2, mlp.scale, mlp.bias)
    assert jnp.allclose(y_bf.astype(jnp.float32), ref_bf.astype(jnp.float32),
                        atol=3e-2, rtol=3e-2)

    print("KERNEL_OK")
</pallas_src>

<mosaic_0001>
module attributes {stable_mosaic.version = 11 : i64} {
  func.func @_mlp_kernel_resident(%arg0: i32, %arg1: memref<256x32xf32, #tpu.memory_space<vmem>>, %arg2: memref<32x128xbf16, #tpu.memory_space<vmem>>, %arg3: memref<128x32xbf16, #tpu.memory_space<vmem>>, %arg4: memref<1x1xf32, #tpu.memory_space<vmem>>, %arg5: memref<1x1xf32, #tpu.memory_space<vmem>>, %arg6: memref<256x32xf32, #tpu.memory_space<vmem>>) attributes {dimension_semantics = [#tpu.dimension_semantics<parallel>], iteration_bounds = array<i64: 2>, scalar_prefetch = 0 : i64, scratch_operands = 0 : i64, tpu.core_type = #tpu.core_type<tc>, window_params = [{transform_indices = @transform_0, window_bounds = array<i64: 256, 32>}, {pipeline_mode = #tpu.pipeline_mode<synchronous>, transform_indices = @transform_1, window_bounds = array<i64: 32, 128>}, {pipeline_mode = #tpu.pipeline_mode<synchronous>, transform_indices = @transform_2, window_bounds = array<i64: 128, 32>}, {pipeline_mode = #tpu.pipeline_mode<synchronous>, transform_indices = @transform_3, window_bounds = array<i64: 1, 1>}, {pipeline_mode = #tpu.pipeline_mode<synchronous>, transform_indices = @transform_4, window_bounds = array<i64: 1, 1>}, {transform_indices = @transform_5, window_bounds = array<i64: 256, 32>}]} {
    %c0 = arith.constant 0 : index
    %c0_0 = arith.constant 0 : index
    %0 = vector.load %arg1[%c0, %c0_0] : memref<256x32xf32, #tpu.memory_space<vmem>>, vector<256x32xf32>
    %1 = arith.truncf %0 : vector<256x32xf32> to vector<256x32xbf16>
    %c0_1 = arith.constant 0 : index
    %c0_2 = arith.constant 0 : index
    %2 = vector.load %arg2[%c0_1, %c0_2] : memref<32x128xbf16, #tpu.memory_space<vmem>>, vector<32x128xbf16>
    %cst = arith.constant dense<0.000000e+00> : vector<256x128xf32>
    %3 = tpu.matmul %1, %2, %cst {dimension_numbers = #tpu.dot_dimension_numbers<[1], [0], [0], [1], [0, 0, 1, 1], [], []>} : vector<256x32xbf16>, vector<32x128xbf16>, vector<256x128xf32> -> vector<256x128xf32>
    %cst_3 = arith.constant 0.000000e+00 : f32
    %4 = vector.broadcast %cst_3 : f32 to vector<256x128xf32>
    %5 = arith.maximumf %3, %4 : vector<256x128xf32>
    %c0_4 = arith.constant 0 : index
    %c0_5 = arith.constant 0 : index
    %6 = vector.load %arg4[%c0_4, %c0_5] : memref<1x1xf32, #tpu.memory_space<vmem>>, vector<1x1xf32>
    %7 = vector.extract %6[0, 0] : f32 from vector<1x1xf32>
    %8 = arith.mulf %5, %5 : vector<256x128xf32>
    %9 = vector.broadcast %7 : f32 to vector<256x128xf32>
    %10 = arith.mulf %9, %8 : vector<256x128xf32>
    %c0_6 = arith.constant 0 : index
    %c0_7 = arith.constant 0 : index
    %11 = vector.load %arg5[%c0_6, %c0_7] : memref<1x1xf32, #tpu.memory_space<vmem>>, vector<1x1xf32>
    %12 = vector.extract %11[0, 0] : f32 from vector<1x1xf32>
    %13 = vector.broadcast %12 : f32 to vector<256x128xf32>
    %14 = arith.addf %10, %13 : vector<256x128xf32>
    %15 = arith.truncf %14 : vector<256x128xf32> to vector<256x128xbf16>
    %c0_8 = arith.constant 0 : index
    %c0_9 = arith.constant 0 : index
    %16 = vector.load %arg3[%c0_8, %c0_9] : memref<128x32xbf16, #tpu.memory_space<vmem>>, vector<128x32xbf16>
    %cst_10 = arith.constant dense<0.000000e+00> : vector<256x32xf32>
    %17 = tpu.matmul %15, %16, %cst_10 {dimension_numbers = #tpu.dot_dimension_numbers<[1], [0], [0], [1], [0, 0, 1, 1], [], []>} : vector<256x128xbf16>, vector<128x32xbf16>, vector<256x32xf32> -> vector<256x32xf32>
    %c0_11 = arith.constant 0 : index
    %c0_12 = arith.constant 0 : index
    %18 = vector.load %arg6[%c0_11, %c0_12] : memref<256x32xf32, #tpu.memory_space<vmem>>, vector<256x32xf32>
    tpu.vector_store %arg6[%c0_11, %c0_12], %17 {strides = array<i32>} : memref<256x32xf32, #tpu.memory_space<vmem>>, vector<256x32xf32>,
    return
  }
  func.func @transform_0(%arg0: i32) -> (i32, i32) {
    %c0_i32 = arith.constant 0 : i32
    %c0_i32_0 = arith.constant 0 : i32
    return %arg0, %c0_i32 : i32, i32
  }
  func.func @transform_1(%arg0: i32) -> (i32, i32) {
    %c0_i32 = arith.constant 0 : i32
    %c0_i32_0 = arith.constant 0 : i32
    %c0_i32_1 = arith.constant 0 : i32
    return %c0_i32, %c0_i32_0 : i32, i32
  }
  func.func @transform_2(%arg0: i32) -> (i32, i32) {
    %c0_i32 = arith.constant 0 : i32
    %c0_i32_0 = arith.constant 0 : i32
    %c0_i32_1 = arith.constant 0 : i32
    return %c0_i32, %c0_i32_0 : i32, i32
  }
  func.func @transform_3(%arg0: i32) -> (i32, i32) {
    %c0_i32 = arith.constant 0 : i32
    %c0_i32_0 = arith.constant 0 : i32
    %c0_i32_1 = arith.constant 0 : i32
    return %c0_i32, %c0_i32_0 : i32, i32
  }
  func.func @transform_4(%arg0: i32) -> (i32, i32) {
    %c0_i32 = arith.constant 0 : i32
    %c0_i32_0 = arith.constant 0 : i32
    %c0_i32_1 = arith.constant 0 : i32
    return %c0_i32, %c0_i32_0 : i32, i32
  }
  func.func @transform_5(%arg0: i32) -> (i32, i32) {
    %c0_i32 = arith.constant 0 : i32
    %c0_i32_0 = arith.constant 0 : i32
    return %arg0, %c0_i32 : i32, i32
  }
}

</mosaic_0001>

<llo_original>
// kernel: tpu_custom_call.1
$region0: #{tpu_custom_call.1}
  #allocation0 [shape = 'u32[]', space=smem, size = 0x4, offset = 0x4, fixed_abs, tag = 'smem constant byte address 0x4 - core index']
  #allocation1 [shape = 'u32[144,128]{1,0:T(1,128)}', space=vmem, size = 0x12000, scoped, tag = 'internal scratch']
  #allocation2 [shape = 'f32[1,1]{1,0:T(1,128)S(1)}', space=vmem, size = 0x200, scoped, tag = 'scoped memory for tpu_custom_call.1']
  #allocation3 [shape = 'f32[1,1]{1,0:T(1,128)S(1)}', space=vmem, size = 0x200, scoped, tag = 'scoped memory for tpu_custom_call.1']
  %s0 = inlined_call_operand.vmem [shape: f32[512,32], index: 0, kind: input, shape index: {}]
  %s1 = inlined_call_operand.vmem [shape: bf16[32,128], index: 1, kind: input, shape index: {}]
  %s2 = inlined_call_operand.vmem [shape: bf16[128,32], index: 2, kind: input, shape index: {}]
  %s3 = inlined_call_operand.<no memory space> [shape: f32[1,1], index: 3, kind: input, shape index: {}]
  %s4 = inlined_call_operand.<no memory space> [shape: f32[1,1], index: 4, kind: input, shape index: {}]
  %s5 = inlined_call_operand.vmem [shape: f32[512,32], index: 5, kind: output, shape index: {}]
  %s6 = sld [smem:[#allocation0]]
  $region53: #{tpu_custom_call.1} parent=0
    _
  %s8 = ssub.s32 1, %s6
  %s9 = scalar_select 0, %s8, %s6
  %v10 = vstv %s3
  %11 = vst [vmem:[#allocation2] sm:$0x1] %v10
  %v12 = vstv %s4
  %13 = vst [vmem:[#allocation3] sm:$0x1] %v12
  loop: start=0, step=1, limit=4
  $region2: #{tpu_custom_call.1} parent=0 // loop_pre_header
    _
  $region3: #{tpu_custom_call.1} parent=0 // loop_header
    %s15 = sphi 0, %s19
    %p16 = scmp.ge.s32.totalorder %s15, 4
    %s25 = sphi 0, %s27
    %s28 = sphi 0, %s25
    %s29 = sphi 0, %s28
    %s45 = sphi 0, %s29
    %s49 = sphi 0, %s49
    %s51 = sphi 0, %s49
    %s52 = sphi 0, %s51
    %s66 = sphi 0, %s52
    %s70 = sphi 0, %s70
    %s72 = sphi 0, %s70
    %s73 = sphi 0, %s72
    %s87 = sphi 0, %s73
    %s91 = sphi 0, %s91
    %s93 = sphi 0, %s91
    %s94 = sphi 0, %s93
    %s108 = sphi 0, %s94
    %s112 = sphi 0, %s112
    %s114 = sphi 0, %s112
    %s115 = sphi 0, %s114
    %s129 = sphi 0, %s115
    %s135 = sphi 0, %s137
    %s138 = sphi 0, %s135
    %s139 = sphi 0, %s138
    %s155 = sphi 0, %s139
  $region4: #{tpu_custom_call.1} parent=0 // loop_header_branch
    %18 = sbr.rel (%p16) target = $region8
  $region5: #{tpu_custom_call.1} parent=0 // loop_body
    %s20 = ssub.s32 %s15, 1
    %s21 = ssub.s32 %s15, 2
    %s22 = sadd.s32 %s15, 1
    %s23 = ssub.s32 %s15, %s22
    %p24 = scmp.eq.s32.totalorder %s23, 0
    %s26 = sadd.s32 %s25, 1
    %s27 = scalar_select %p24, %s25, %s26
    %p30 = pneg %p24
    %p31 = scmp.eq.s32.totalorder %s15, 1
    %p32 = por %p30, %p31
    %p33 = scmp.ne.s32.totalorder %s25, %s28
    %p34 = scmp.eq.s32.totalorder %s15, 0
    %p35 = por %p33, %p34
    %p36 = scmp.ne.s32.totalorder %s25, %s28
    %p37 = scmp.eq.s32.totalorder %s20, 1
    %p38 = por %p36, %p37
    %p39 = scmp.ne.s32.totalorder %s28, %s29
    %p40 = scmp.eq.s32.totalorder %s20, 0
    %p41 = por %p39, %p40
    %p42 = scmp.ne.s32.totalorder %s28, %s29
    %p43 = scmp.eq.s32.totalorder %s21, 1
    %p44 = por %p42, %p43
    %p46 = scmp.ne.s32.totalorder %s29, %s45
    %p47 = scmp.eq.s32.totalorder %s21, 0
    %p48 = por %p46, %p47
    %s50 = sadd.s32 %s49, 1
    %p53 = scmp.eq.s32.totalorder %s15, 1
    %p54 = scmp.ne.s32.totalorder %s49, %s51
    %p55 = scmp.eq.s32.totalorder %s15, 0
    %p56 = por %p54, %p55
    %p57 = scmp.ne.s32.totalorder %s49, %s51
    %p58 = scmp.eq.s32.totalorder %s20, 1
    %p59 = por %p57, %p58
    %p60 = scmp.ne.s32.totalorder %s51, %s52
    %p61 = scmp.eq.s32.totalorder %s20, 0
    %p62 = por %p60, %p61
    %p63 = scmp.ne.s32.totalorder %s51, %s52
    %p64 = scmp.eq.s32.totalorder %s21, 1
    %p65 = por %p63, %p64
    %p67 = scmp.ne.s32.totalorder %s52, %s66
    %p68 = scmp.eq.s32.totalorder %s21, 0
    %p69 = por %p67, %p68
    %s71 = sadd.s32 %s70, 1
    %p74 = scmp.eq.s32.totalorder %s15, 1
    %p75 = scmp.ne.s32.totalorder %s70, %s72
    %p76 = scmp.eq.s32.totalorder %s15, 0
    %p77 = por %p75, %p76
    %p78 = scmp.ne.s32.totalorder %s70, %s72
    %p79 = scmp.eq.s32.totalorder %s20, 1
    %p80 = por %p78, %p79
    %p81 = scmp.ne.s32.totalorder %s72, %s73
    %p82 = scmp.eq.s32.totalorder %s20, 0
    %p83 = por %p81, %p82
    %p84 = scmp.ne.s32.totalorder %s72, %s73
    %p85 = scmp.eq.s32.totalorder %s21, 1
    %p86 = por %p84, %p85
    %p88 = scmp.ne.s32.totalorder %s73, %s87
    %p89 = scmp.eq.s32.totalorder %s21, 0
    %p90 = por %p88, %p89
    %s92 = sadd.s32 %s91, 1
    %p95 = scmp.eq.s32.totalorder %s15, 1
    %p96 = scmp.ne.s32.totalorder %s91, %s93
    %p97 = scmp.eq.s32.totalorder %s15, 0
    %p98 = por %p96, %p97
    %p99 = scmp.ne.s32.totalorder %s91, %s93
    %p100 = scmp.eq.s32.totalorder %s20, 1
    %p101 = por %p99, %p100
    %p102 = scmp.ne.s32.totalorder %s93, %s94
    %p103 = scmp.eq.s32.totalorder %s20, 0
    %p104 = por %p102, %p103
    %p105 = scmp.ne.s32.totalorder %s93, %s94
    %p106 = scmp.eq.s32.totalorder %s21, 1
    %p107 = por %p105, %p106
    %p109 = scmp.ne.s32.totalorder %s94, %s108
    %p110 = scmp.eq.s32.totalorder %s21, 0
    %p111 = por %p109, %p110
    %s113 = sadd.s32 %s112, 1
    %p116 = scmp.eq.s32.totalorder %s15, 1
    %p117 = scmp.ne.s32.totalorder %s112, %s114
    %p118 = scmp.eq.s32.totalorder %s15, 0
    %p119 = por %p117, %p118
    %p120 = scmp.ne.s32.totalorder %s112, %s114
    %p121 = scmp.eq.s32.totalorder %s20, 1
    %p122 = por %p120, %p121
    %p123 = scmp.ne.s32.totalorder %s114, %s115
    %p124 = scmp.eq.s32.totalorder %s20, 0
    %p125 = por %p123, %p124
    %p126 = scmp.ne.s32.totalorder %s114, %s115
    %p127 = scmp.eq.s32.totalorder %s21, 1
    %p128 = por %p126, %p127
    %p130 = scmp.ne.s32.totalorder %s115, %s129
    %p131 = scmp.eq.s32.totalorder %s21, 0
    %p132 = por %p130, %p131
    %s133 = ssub.s32 %s15, %s22
    %p134 = scmp.eq.s32.totalorder %s133, 0
    %s136 = sadd.s32 %s135, 1
    %s137 = scalar_select %p134, %s135, %s136
    %p140 = pneg %p134
    %p141 = scmp.eq.s32.totalorder %s15, 1
    %p142 = por %p140, %p141
    %p143 = scmp.ne.s32.totalorder %s135, %s138
    %p144 = scmp.eq.s32.totalorder %s15, 0
    %p145 = por %p143, %p144
    %p146 = scmp.ne.s32.totalorder %s135, %s138
    %p147 = scmp.eq.s32.totalorder %s20, 1
    %p148 = por %p146, %p147
    %p149 = scmp.ne.s32.totalorder %s138, %s139
    %p150 = scmp.eq.s32.totalorder %s20, 0
    %p151 = por %p149, %p150
    %p152 = scmp.ne.s32.totalorder %s138, %s139
    %p153 = scmp.eq.s32.totalorder %s21, 1
    %p154 = por %p152, %p153
    %p156 = scmp.ne.s32.totalorder %s139, %s155
    %p157 = scmp.eq.s32.totalorder %s21, 0
    %p158 = por %p156, %p157
    %p159 = scmp.le.s32.totalorder 1, %s15
    %p160 = scmp.lt.s32.totalorder %s15, 3
    %p161 = pnand %p159, %p160
    %p162 = pneg %p161
    // Predicated region
    $region9: #{tpu_custom_call.1} parent=5 // pred_check
      _
    $region10: #{tpu_custom_call.1} parent=5 // pred_check_branch
      %164 = sbr.rel (%p161) target = $region12
    $region11: #{tpu_custom_call.1} parent=5 // pred_region
      %s165 = ssub.s32 %s15, 1
      // Predicated region
      $region13: #{tpu_custom_call.1} parent=11 // pred_check
        %p166 = pneg %p62
      $region14: #{tpu_custom_call.1} parent=11 // pred_check_branch
        %168 = sbr.rel (%p166) target = $region16
      $region15: #{tpu_custom_call.1} parent=11 // pred_region
        _
      $region16: #{tpu_custom_call.1} parent=11 // pred_fallthru
        _
      // Predicated region
      $region17: #{tpu_custom_call.1} parent=11 // pred_check
        %p169 = pneg %p83
      $region18: #{tpu_custom_call.1} parent=11 // pred_check_branch
        %171 = sbr.rel (%p169) target = $region20
      $region19: #{tpu_custom_call.1} parent=11 // pred_region
        _
      $region20: #{tpu_custom_call.1} parent=11 // pred_fallthru
        _
      // Predicated region
      $region21: #{tpu_custom_call.1} parent=11 // pred_check
        %p172 = pneg %p104
      $region22: #{tpu_custom_call.1} parent=11 // pred_check_branch
        %174 = sbr.rel (%p172) target = $region24
      $region23: #{tpu_custom_call.1} parent=11 // pred_region
        _
      $region24: #{tpu_custom_call.1} parent=11 // pred_fallthru
        _
      // Predicated region
      $region25: #{tpu_custom_call.1} parent=11 // pred_check
        %p175 = pneg %p125
      $region26: #{tpu_custom_call.1} parent=11 // pred_check_branch
        %177 = sbr.rel (%p175) target = $region28
      $region27: #{tpu_custom_call.1} parent=11 // pred_region
        _
      $region28: #{tpu_custom_call.1} parent=11 // pred_fallthru
        _
    $region12: #{tpu_custom_call.1} parent=5 // pred_fallthru
      _
    %p178 = scmp.lt.s32.totalorder %s15, 2
    // Predicated region
    $region29: #{tpu_custom_call.1} parent=5 // pred_check
      %p179 = pneg %p178
    $region30: #{tpu_custom_call.1} parent=5 // pred_check_branch
      %181 = sbr.rel (%p179) target = $region32
    $region31: #{tpu_custom_call.1} parent=5 // pred_region
      // Predicated region
      $region33: #{tpu_custom_call.1} parent=31 // pred_check
        %p182 = pneg %p35
      $region34: #{tpu_custom_call.1} parent=31 // pred_check_branch
        %184 = sbr.rel (%p182) target = $region36
      $region35: #{tpu_custom_call.1} parent=31 // pred_region
        %s185 = smul.u32 32, %s15
        %p186 = scmp.lt.s32.totalorder %s185, 63
        %s187 = scalar_select %p186, %s185, 63
        %s188 = smul.addr %s187, 8
        %s189 = scalar_lea.vmem %s0, %s188
        %s190 = smul.u32 32, %s15
      $region36: #{tpu_custom_call.1} parent=31 // pred_fallthru
        _
    $region32: #{tpu_custom_call.1} parent=5 // pred_fallthru
      _
    %p191 = scmp.le.s32.totalorder 1, %s15
    %p192 = scmp.lt.s32.totalorder %s15, 3
    %p193 = pnand %p191, %p192
    %p194 = pneg %p193
    // Predicated region
    $region37: #{tpu_custom_call.1} parent=5 // pred_check
      _
    $region38: #{tpu_custom_call.1} parent=5 // pred_check_branch
      %196 = sbr.rel (%p193) target = $region40
    $region39: #{tpu_custom_call.1} parent=5 // pred_region
      %s197 = ssub.s32 %s15, 1
      %s198 = smul.u32 32, %s20
      %p199 = scmp.lt.s32.totalorder %s198, 63
      %s200 = scalar_select %p199, %s198, 63
      %s201 = smul.addr %s200, 8
      %s202 = scalar_lea.vmem %s0, %s201
      %p203 = pneg %p41
      %p204 = pneg %p38
      %p205 = pneg %p62
      %p206 = pneg %p59
      %p207 = pneg %p83
      %p208 = pneg %p80
      %p209 = pneg %p104
      %p210 = pneg %p101
      %p211 = pneg %p125
      %p212 = pneg %p122
      %p213 = pneg %p151
      %p214 = pneg %p148
      %s215 = smul.u32 32, %s20
      %p216 = scmp.lt.s32.totalorder %s215, 63
      %s217 = scalar_select %p216, %s215, 63
      %s218 = smul.addr %s217, 8
      %s219 = scalar_lea.vmem %s5, %s218
      %s220 = smul.u32 32, %s20
      %p221 = scmp.lt.s32.totalorder %s220, 63
      %s222 = scalar_select %p221, %s220, 63
      %s223 = smul.addr %s222, 8
      %s224 = scalar_lea.vmem %s0, %s223
      %s225 = smul.u32 32, %s20
      %s226 = smul.u32 32, %s20
      %p227 = scmp.lt.s32.totalorder %s226, 63
      %s228 = scalar_select %p227, %s226, 63
      %s229 = smul.addr %s228, 8
      %s230 = scalar_lea.vmem %s5, %s229
      %s231 = smul.u32 32, %s20
      %v233 = vld [vmem:[%s224] sm:$0xff]
      %v234 = vld [vmem:[%s224 + $0x8] sm:$0xff]
      %v235 = vld [vmem:[%s224 + $0x10] sm:$0xff]
      %v236 = vld [vmem:[%s224 + $0x18] sm:$0xff]
      %v237 = vld [vmem:[%s224 + $0x20] sm:$0xff]
      %v238 = vld [vmem:[%s224 + $0x28] sm:$0xff]
      %v239 = vld [vmem:[%s224 + $0x30] sm:$0xff]
      %v240 = vld [vmem:[%s224 + $0x38] sm:$0xff]
      %v241 = vld [vmem:[%s224 + $0x40] sm:$0xff]
      %v242 = vld [vmem:[%s224 + $0x48] sm:$0xff]
      %v243 = vld [vmem:[%s224 + $0x50] sm:$0xff]
      %v244 = vld [vmem:[%s224 + $0x58] sm:$0xff]
      %v245 = vld [vmem:[%s224 + $0x60] sm:$0xff]
      %v246 = vld [vmem:[%s224 + $0x68] sm:$0xff]
      %v247 = vld [vmem:[%s224 + $0x70] sm:$0xff]
      %v248 = vld [vmem:[%s224 + $0x78] sm:$0xff]
      %v249 = vld [vmem:[%s224 + $0x80] sm:$0xff]
      %v250 = vld [vmem:[%s224 + $0x88] sm:$0xff]
      %v251 = vld [vmem:[%s224 + $0x90] sm:$0xff]
      %v252 = vld [vmem:[%s224 + $0x98] sm:$0xff]
      %v253 = vld [vmem:[%s224 + $0xa0] sm:$0xff]
      %v254 = vld [vmem:[%s224 + $0xa8] sm:$0xff]
      %v255 = vld [vmem:[%s224 + $0xb0] sm:$0xff]
      %v256 = vld [vmem:[%s224 + $0xb8] sm:$0xff]
      %v257 = vld [vmem:[%s224 + $0xc0] sm:$0xff]
      %v258 = vld [vmem:[%s224 + $0xc8] sm:$0xff]
      %v259 = vld [vmem:[%s224 + $0xd0] sm:$0xff]
      %v260 = vld [vmem:[%s224 + $0xd8] sm:$0xff]
      %v261 = vld [vmem:[%s224 + $0xe0] sm:$0xff]
      %v262 = vld [vmem:[%s224 + $0xe8] sm:$0xff]
      %v263 = vld [vmem:[%s224 + $0xf0] sm:$0xff]
      %v264 = vld [vmem:[%s224 + $0xf8] sm:$0xff]
      %v265 = vpack.c.bf16 %v234, %v233
      %v266 = vpack.c.bf16 %v236, %v235
      %v267 = vpack.c.bf16 %v238, %v237
      %v268 = vpack.c.bf16 %v240, %v239
      %v269 = vpack.c.bf16 %v242, %v241
      %v270 = vpack.c.bf16 %v244, %v243
      %v271 = vpack.c.bf16 %v246, %v245
      %v272 = vpack.c.bf16 %v248, %v247
      %v273 = vpack.c.bf16 %v250, %v249
      %v274 = vpack.c.bf16 %v252, %v251
      %v275 = vpack.c.bf16 %v254, %v253
      %v276 = vpack.c.bf16 %v256, %v255
      %v277 = vpack.c.bf16 %v258, %v257
      %v278 = vpack.c.bf16 %v260, %v259
      %v279 = vpack.c.bf16 %v262, %v261
      %v280 = vpack.c.bf16 %v264, %v263
      %v281 = vld [vmem:[%s1] sm:$0xf]
      %v282 = vld [vmem:[%s1 + $0x4] sm:$0xf]
      %v283 = vld [vmem:[%s1 + $0x8] sm:$0xf]
      %v284 = vld [vmem:[%s1 + $0xc] sm:$0xf]
      %v289 = vunpack.c.l.b16 %v281
      %v290 = vunpack.c.l.b16 %v282
      %v291 = vunpack.c.l.b16 %v283
      %v292 = vunpack.c.l.b16 %v284
      %v293 = vpack.c.b16 %v290, %v289
      %v294 = vpack.c.b16 %v292, %v291
      %vm297 = vcmask 261120
      %v299 = vsel %vm297, %v265, 0
      %v302 = vsel %vm297, %v266, 0
      %v305 = vsel %vm297, %v267, 0
      %v308 = vsel %vm297, %v268, 0
      %v311 = vsel %vm297, %v269, 0
      %v314 = vsel %vm297, %v270, 0
      %v317 = vsel %vm297, %v271, 0
      %v320 = vsel %vm297, %v272, 0
      %v323 = vsel %vm297, %v273, 0
      %v326 = vsel %vm297, %v274, 0
      %v329 = vsel %vm297, %v275, 0
      %v332 = vsel %vm297, %v276, 0
      %v335 = vsel %vm297, %v277, 0
      %v338 = vsel %vm297, %v278, 0
      %v341 = vsel %vm297, %v279, 0
      %v344 = vsel %vm297, %v280, 0
      %346 = vmatprep.subr.bf16.mxu0 0
      %347 = vmatpush1.bf16.msra.mxu0 0
      %348 = vmatprep.subr.bf16.mxu0 0
      %349 = vmatpush1.bf16.msra.mxu0 0
      %350 = vmatprep.subr.bf16.mxu0 0
      %351 = vmatpush1.bf16.msra.mxu0 0
      %352 = vmatprep.subr.bf16.mxu0 0
      %353 = vmatpush1.bf16.msra.mxu0 0
      %354 = vmatprep.subr.bf16.mxu0 0
      %355 = vmatpush1.bf16.msra.mxu0 0
      %356 = vmatprep.subr.bf16.mxu0 0
      %357 = vmatpush1.bf16.msra.mxu0 0
      %358 = vmatprep.subr.bf16.mxu0 0
      %359 = vmatpush1.bf16.msra.mxu0 %v294
      %360 = vmatprep.subr.bf16.mxu0 0
      %361 = vmatpush1.bf16.msra.mxu0 %v293
      %362 = vmatprep.subr.bf16.mxu0 0
      %363 = vmatpush2.bf16.msra.mxu0 0
      %364 = vmatprep.subr.bf16.mxu0 0
      %365 = vmatpush2.bf16.msra.mxu0 0
      %366 = vmatprep.subr.bf16.mxu0 0
      %367 = vmatpush2.bf16.msra.mxu0 0
      %368 = vmatprep.subr.bf16.mxu0 0
      %369 = vmatpush2.bf16.msra.mxu0 0
      %370 = vmatprep.subr.bf16.mxu0 0
      %371 = vmatpush2.bf16.msra.mxu0 0
      %372 = vmatprep.subr.bf16.mxu0 0
      %373 = vmatpush2.bf16.msra.mxu0 0
      %374 = vmatprep.subr.bf16.mxu0 0
      %375 = vmatpush2.bf16.msra.mxu0 0
      %376 = vmatprep.subr.bf16.mxu0 0
      %377 = vmatpush2.bf16.msra.mxu0 0
      %378 = vmatprep.mubr.bf16.mxu0 0
      %379 = vmatmul.mubr.bf16.gmra.mxu0 %v299
      %v380 = vpop.f32.mrf.mxu0
      %v381 = vadd.f32 0.0, %v380
      %v382 = vpop.f32.mrf.mxu0
      %v383 = vpop.f32.mrf.mxu0
      %v384 = vadd.f32 0.0, %v383
      %v385 = vpop.f32.mrf.mxu0
      %386 = vmatprep.mubr.bf16.mxu0 0
      %387 = vmatmul.mubr.bf16.gmra.mxu0 %v302
      %v388 = vpop.f32.mrf.mxu0
      %v389 = vadd.f32 0.0, %v388
      %v390 = vpop.f32.mrf.mxu0
      %v391 = vpop.f32.mrf.mxu0
      %v392 = vadd.f32 0.0, %v391
      %v393 = vpop.f32.mrf.mxu0
      %394 = vmatprep.mubr.bf16.mxu0 0
      %395 = vmatmul.mubr.bf16.gmra.mxu0 %v305
      %v396 = vpop.f32.mrf.mxu0
      %v397 = vadd.f32 0.0, %v396
      %v398 = vpop.f32.mrf.mxu0
      %v399 = vpop.f32.mrf.mxu0
      %v400 = vadd.f32 0.0, %v399
      %v401 = vpop.f32.mrf.mxu0
      %402 = vmatprep.mubr.bf16.mxu0 0
      %403 = vmatmul.mubr.bf16.gmra.mxu0 %v308
      %v404 = vpop.f32.mrf.mxu0
      %v405 = vadd.f32 0.0, %v404
      %v406 = vpop.f32.mrf.mxu0
      %v407 = vpop.f32.mrf.mxu0
      %v408 = vadd.f32 0.0, %v407
      %v409 = vpop.f32.mrf.mxu0
      %410 = vmatprep.mubr.bf16.mxu0 0
      %411 = vmatmul.mubr.bf16.gmra.mxu0 %v311
      %v412 = vpop.f32.mrf.mxu0
      %v413 = vadd.f32 0.0, %v412
      %v414 = vpop.f32.mrf.mxu0
      %v415 = vpop.f32.mrf.mxu0
      %v416 = vadd.f32 0.0, %v415
      %v417 = vpop.f32.mrf.mxu0
      %418 = vmatprep.mubr.bf16.mxu0 0
      %419 = vmatmul.mubr.bf16.gmra.mxu0 %v314
      %v420 = vpop.f32.mrf.mxu0
      %v421 = vadd.f32 0.0, %v420
      %v422 = vpop.f32.mrf.mxu0
      %v423 = vpop.f32.mrf.mxu0
      %v424 = vadd.f32 0.0, %v423
      %v425 = vpop.f32.mrf.mxu0
      %426 = vmatprep.mubr.bf16.mxu0 0
      %427 = vmatmul.mubr.bf16.gmra.mxu0 %v317
      %v428 = vpop.f32.mrf.mxu0
      %v429 = vadd.f32 0.0, %v428
      %v430 = vpop.f32.mrf.mxu0
      %v431 = vpop.f32.mrf.mxu0
      %v432 = vadd.f32 0.0, %v431
      %v433 = vpop.f32.mrf.mxu0
      %434 = vmatprep.mubr.bf16.mxu0 0
      %435 = vmatmul.mubr.bf16.gmra.mxu0 %v320
      %v436 = vpop.f32.mrf.mxu0
      %v437 = vadd.f32 0.0, %v436
      %v438 = vpop.f32.mrf.mxu0
      %v439 = vpop.f32.mrf.mxu0
      %v440 = vadd.f32 0.0, %v439
      %v441 = vpop.f32.mrf.mxu0
      %442 = vmatprep.mubr.bf16.mxu0 0
      %443 = vmatmul.mubr.bf16.gmra.mxu0 %v323
      %v444 = vpop.f32.mrf.mxu0
      %v445 = vadd.f32 0.0, %v444
      %v446 = vpop.f32.mrf.mxu0
      %v447 = vpop.f32.mrf.mxu0
      %v448 = vadd.f32 0.0, %v447
      %v449 = vpop.f32.mrf.mxu0
      %450 = vmatprep.mubr.bf16.mxu0 0
      %451 = vmatmul.mubr.bf16.gmra.mxu0 %v326
      %v452 = vpop.f32.mrf.mxu0
      %v453 = vadd.f32 0.0, %v452
      %v454 = vpop.f32.mrf.mxu0
      %v455 = vpop.f32.mrf.mxu0
      %v456 = vadd.f32 0.0, %v455
      %v457 = vpop.f32.mrf.mxu0
      %458 = vmatprep.mubr.bf16.mxu0 0
      %459 = vmatmul.mubr.bf16.gmra.mxu0 %v329
      %v460 = vpop.f32.mrf.mxu0
      %v461 = vadd.f32 0.0, %v460
      %v462 = vpop.f32.mrf.mxu0
      %v463 = vpop.f32.mrf.mxu0
      %v464 = vadd.f32 0.0, %v463
      %v465 = vpop.f32.mrf.mxu0
      %466 = vmatprep.mubr.bf16.mxu0 0
      %467 = vmatmul.mubr.bf16.gmra.mxu0 %v332
      %v468 = vpop.f32.mrf.mxu0
      %v469 = vadd.f32 0.0, %v468
      %v470 = vpop.f32.mrf.mxu0
      %v471 = vpop.f32.mrf.mxu0
      %v472 = vadd.f32 0.0, %v471
      %v473 = vpop.f32.mrf.mxu0
      %474 = vmatprep.mubr.bf16.mxu0 0
      %475 = vmatmul.mubr.bf16.gmra.mxu0 %v335
      %v476 = vpop.f32.mrf.mxu0
      %v477 = vadd.f32 0.0, %v476
      %v478 = vpop.f32.mrf.mxu0
      %v479 = vpop.f32.mrf.mxu0
      %v480 = vadd.f32 0.0, %v479
      %v481 = vpop.f32.mrf.mxu0
      %482 = vmatprep.mubr.bf16.mxu0 0
      %483 = vmatmul.mubr.bf16.gmra.mxu0 %v338
      %v484 = vpop.f32.mrf.mxu0
      %v485 = vadd.f32 0.0, %v484
      %v486 = vpop.f32.mrf.mxu0
      %v487 = vpop.f32.mrf.mxu0
      %v488 = vadd.f32 0.0, %v487
      %v489 = vpop.f32.mrf.mxu0
      %490 = vmatprep.mubr.bf16.mxu0 0
      %491 = vmatmul.mubr.bf16.gmra.mxu0 %v341
      %v492 = vpop.f32.mrf.mxu0
      %v493 = vadd.f32 0.0, %v492
      %v494 = vpop.f32.mrf.mxu0
      %v495 = vpop.f32.mrf.mxu0
      %v496 = vadd.f32 0.0, %v495
      %v497 = vpop.f32.mrf.mxu0
      %498 = vmatprep.mubr.bf16.mxu0 0
      %499 = vmatmul.mubr.bf16.gmra.mxu0 %v344
      %v500 = vpop.f32.mrf.mxu0
      %v501 = vadd.f32 0.0, %v500
      %v502 = vpop.f32.mrf.mxu0
      %v503 = vpop.f32.mrf.mxu0
      %v504 = vadd.f32 0.0, %v503
      %v505 = vpop.f32.mrf.mxu0
      %506 = vdwg.mxu0
      %v507 = vmax.f32 %v381, 0.0
      %v508 = vmax.f32 %v384, 0.0
      %v509 = vmax.f32 %v389, 0.0
      %v510 = vmax.f32 %v392, 0.0
      %v511 = vmax.f32 %v397, 0.0
      %v512 = vmax.f32 %v400, 0.0
      %v513 = vmax.f32 %v405, 0.0
      %v514 = vmax.f32 %v408, 0.0
      %v515 = vmax.f32 %v413, 0.0
      %v516 = vmax.f32 %v416, 0.0
      %v517 = vmax.f32 %v421, 0.0
      %v518 = vmax.f32 %v424, 0.0
      %v519 = vmax.f32 %v429, 0.0
      %v520 = vmax.f32 %v432, 0.0
      %v521 = vmax.f32 %v437, 0.0
      %v522 = vmax.f32 %v440, 0.0
      %v523 = vmax.f32 %v445, 0.0
      %v524 = vmax.f32 %v448, 0.0
      %v525 = vmax.f32 %v453, 0.0
      %v526 = vmax.f32 %v456, 0.0
      %v527 = vmax.f32 %v461, 0.0
      %v528 = vmax.f32 %v464, 0.0
      %v529 = vmax.f32 %v469, 0.0
      %v530 = vmax.f32 %v472, 0.0
      %v531 = vmax.f32 %v477, 0.0
      %v532 = vmax.f32 %v480, 0.0
      %v533 = vmax.f32 %v485, 0.0
      %v534 = vmax.f32 %v488, 0.0
      %v535 = vmax.f32 %v493, 0.0
      %v536 = vmax.f32 %v496, 0.0
      %v537 = vmax.f32 %v501, 0.0
      %v538 = vmax.f32 %v504, 0.0
      %v539 = vld [vmem:[#allocation2] sm:$0x1]
      %s540 = vtos %v539
      %v541 = vmul.f32 %v507, %v507
      %v542 = vmul.f32 %v508, %v508
      %v543 = vmul.f32 %v509, %v509
      %v544 = vmul.f32 %v510, %v510
      %v545 = vmul.f32 %v511, %v511
      %v546 = vmul.f32 %v512, %v512
      %v547 = vmul.f32 %v513, %v513
      %v548 = vmul.f32 %v514, %v514
      %v549 = vmul.f32 %v515, %v515
      %v550 = vmul.f32 %v516, %v516
      %v551 = vmul.f32 %v517, %v517
      %v552 = vmul.f32 %v518, %v518
      %v553 = vmul.f32 %v519, %v519
      %v554 = vmul.f32 %v520, %v520
      %v555 = vmul.f32 %v521, %v521
      %v556 = vmul.f32 %v522, %v522
      %v557 = vmul.f32 %v523, %v523
      %v558 = vmul.f32 %v524, %v524
      %v559 = vmul.f32 %v525, %v525
      %v560 = vmul.f32 %v526, %v526
      %v561 = vmul.f32 %v527, %v527
      %v562 = vmul.f32 %v528, %v528
      %v563 = vmul.f32 %v529, %v529
      %v564 = vmul.f32 %v530, %v530
      %v565 = vmul.f32 %v531, %v531
      %v566 = vmul.f32 %v532, %v532
      %v567 = vmul.f32 %v533, %v533
      %v568 = vmul.f32 %v534, %v534
      %v569 = vmul.f32 %v535, %v535
      %v570 = vmul.f32 %v536, %v536
      %v571 = vmul.f32 %v537, %v537
      %v572 = vmul.f32 %v538, %v538
      %v573 = vstv %s540
      %v574 = vmul.f32 %v573, %v541
      %v575 = vmul.f32 %v573, %v542
      %v576 = vmul.f32 %v573, %v543
      %v577 = vmul.f32 %v573, %v544
      %v578 = vmul.f32 %v573, %v545
      %v579 = vmul.f32 %v573, %v546
      %v580 = vmul.f32 %v573, %v547
      %v581 = vmul.f32 %v573, %v548
      %v582 = vmul.f32 %v573, %v549
      %v583 = vmul.f32 %v573, %v550
      %v584 = vmul.f32 %v573, %v551
      %v585 = vmul.f32 %v573, %v552
      %v586 = vmul.f32 %v573, %v553
      %v587 = vmul.f32 %v573, %v554
      %v588 = vmul.f32 %v573, %v555
      %v589 = vmul.f32 %v573, %v556
      %v590 = vmul.f32 %v573, %v557
      %v591 = vmul.f32 %v573, %v558
      %v592 = vmul.f32 %v573, %v559
      %v593 = vmul.f32 %v573, %v560
      %v594 = vmul.f32 %v573, %v561
      %v595 = vmul.f32 %v573, %v562
      %v596 = vmul.f32 %v573, %v563
      %v597 = vmul.f32 %v573, %v564
      %v598 = vmul.f32 %v573, %v565
      %v599 = vmul.f32 %v573, %v566
      %v600 = vmul.f32 %v573, %v567
      %v601 = vmul.f32 %v573, %v568
      %v602 = vmul.f32 %v573, %v569
      %v603 = vmul.f32 %v573, %v570
      %v604 = vmul.f32 %v573, %v571
      %v605 = vmul.f32 %v573, %v572
      %v606 = vld [vmem:[#allocation3] sm:$0x1]
      %s607 = vtos %v606
      %v608 = vstv %s607
      %v609 = vadd.f32 %v574, %v608
      %v610 = vadd.f32 %v575, %v608
      %v611 = vadd.f32 %v576, %v608
      %v612 = vadd.f32 %v577, %v608
      %v613 = vadd.f32 %v578, %v608
      %v614 = vadd.f32 %v579, %v608
      %v615 = vadd.f32 %v580, %v608
      %v616 = vadd.f32 %v581, %v608
      %v617 = vadd.f32 %v582, %v608
      %v618 = vadd.f32 %v583, %v608
      %v619 = vadd.f32 %v584, %v608
      %v620 = vadd.f32 %v585, %v608
      %v621 = vadd.f32 %v586, %v608
      %v622 = vadd.f32 %v587, %v608
      %v623 = vadd.f32 %v588, %v608
      %v624 = vadd.f32 %v589, %v608
      %v625 = vadd.f32 %v590, %v608
      %v626 = vadd.f32 %v591, %v608
      %v627 = vadd.f32 %v592, %v608
      %v628 = vadd.f32 %v593, %v608
      %v629 = vadd.f32 %v594, %v608
      %v630 = vadd.f32 %v595, %v608
      %v631 = vadd.f32 %v596, %v608
      %v632 = vadd.f32 %v597, %v608
      %v633 = vadd.f32 %v598, %v608
      %v634 = vadd.f32 %v599, %v608
      %v635 = vadd.f32 %v600, %v608
      %v636 = vadd.f32 %v601, %v608
      %v637 = vadd.f32 %v602, %v608
      %v638 = vadd.f32 %v603, %v608
      %v639 = vadd.f32 %v604, %v608
      %v640 = vadd.f32 %v605, %v608
      %v641 = vpack.c.bf16 %v610, %v609
      %v642 = vpack.c.bf16 %v612, %v611
      %v643 = vpack.c.bf16 %v614, %v613
      %v644 = vpack.c.bf16 %v616, %v615
      %v645 = vpack.c.bf16 %v618, %v617
      %v646 = vpack.c.bf16 %v620, %v619
      %v647 = vpack.c.bf16 %v622, %v621
      %v648 = vpack.c.bf16 %v624, %v623
      %v649 = vpack.c.bf16 %v626, %v625
      %v650 = vpack.c.bf16 %v628, %v627
      %v651 = vpack.c.bf16 %v630, %v629
      %v652 = vpack.c.bf16 %v632, %v631
      %v653 = vpack.c.bf16 %v634, %v633
      %v654 = vpack.c.bf16 %v636, %v635
      %v655 = vpack.c.bf16 %v638, %v637
      %v656 = vpack.c.bf16 %v640, %v639
      %v657 = vld [vmem:[%s2] sm:$0xf]
      %v658 = vld [vmem:[%s2 + $0x4] sm:$0xf]
      %v659 = vld [vmem:[%s2 + $0x8] sm:$0xf]
      %v660 = vld [vmem:[%s2 + $0xc] sm:$0xf]
      %v661 = vld [vmem:[%s2 + $0x10] sm:$0xf]
      %v662 = vld [vmem:[%s2 + $0x14] sm:$0xf]
      %v663 = vld [vmem:[%s2 + $0x18] sm:$0xf]
      %v664 = vld [vmem:[%s2 + $0x1c] sm:$0xf]
      %v665 = vld [vmem:[%s2 + $0x20] sm:$0xf]
      %v666 = vld [vmem:[%s2 + $0x24] sm:$0xf]
      %v667 = vld [vmem:[%s2 + $0x28] sm:$0xf]
      %v668 = vld [vmem:[%s2 + $0x2c] sm:$0xf]
      %v669 = vld [vmem:[%s2 + $0x30] sm:$0xf]
      %v670 = vld [vmem:[%s2 + $0x34] sm:$0xf]
      %v671 = vld [vmem:[%s2 + $0x38] sm:$0xf]
      %v672 = vld [vmem:[%s2 + $0x3c] sm:$0xf]
      %v689 = vunpack.c.l.b16 %v657
      %v690 = vunpack.c.l.b16 %v658
      %v691 = vunpack.c.l.b16 %v659
      %v692 = vunpack.c.l.b16 %v660
      %v693 = vunpack.c.l.b16 %v661
      %v694 = vunpack.c.l.b16 %v662
      %v695 = vunpack.c.l.b16 %v663
      %v696 = vunpack.c.l.b16 %v664
      %v697 = vunpack.c.l.b16 %v665
      %v698 = vunpack.c.l.b16 %v666
      %v699 = vunpack.c.l.b16 %v667
      %v700 = vunpack.c.l.b16 %v668
      %v701 = vunpack.c.l.b16 %v669
      %v702 = vunpack.c.l.b16 %v670
      %v703 = vunpack.c.l.b16 %v671
      %v704 = vunpack.c.l.b16 %v672
      %v705 = vpack.c.b16 %v690, %v689
      %v706 = vpack.c.b16 %v692, %v691
      %v707 = vpack.c.b16 %v694, %v693
      %v708 = vpack.c.b16 %v696, %v695
      %v709 = vpack.c.b16 %v698, %v697
      %v710 = vpack.c.b16 %v700, %v699
      %v711 = vpack.c.b16 %v702, %v701
      %v712 = vpack.c.b16 %v704, %v703
      %721 = vmatprep.subr.bf16.mxu0 0
      %722 = vmatpush1.bf16.msra.mxu0 %v712
      %723 = vmatprep.subr.bf16.mxu0 0
      %724 = vmatpush1.bf16.msra.mxu0 %v711
      %725 = vmatprep.subr.bf16.mxu0 0
      %726 = vmatpush1.bf16.msra.mxu0 %v710
      %727 = vmatprep.subr.bf16.mxu0 0
      %728 = vmatpush1.bf16.msra.mxu0 %v709
      %729 = vmatprep.subr.bf16.mxu0 0
      %730 = vmatpush1.bf16.msra.mxu0 %v708
      %731 = vmatprep.subr.bf16.mxu0 0
      %732 = vmatpush1.bf16.msra.mxu0 %v707
      %733 = vmatprep.subr.bf16.mxu0 0
      %734 = vmatpush1.bf16.msra.mxu0 %v706
      %735 = vmatprep.subr.bf16.mxu0 0
      %736 = vmatpush1.bf16.msra.mxu0 %v705
      %737 = vmatprep.subr.bf16.mxu0 0
      %738 = vmatpush2.bf16.msra.mxu0 0
      %739 = vmatprep.subr.bf16.mxu0 0
      %740 = vmatpush2.bf16.msra.mxu0 0
      %741 = vmatprep.subr.bf16.mxu0 0
      %742 = vmatpush2.bf16.msra.mxu0 0
      %743 = vmatprep.subr.bf16.mxu0 0
      %744 = vmatpush2.bf16.msra.mxu0 0
      %745 = vmatprep.subr.bf16.mxu0 0
      %746 = vmatpush2.bf16.msra.mxu0 0
      %747 = vmatprep.subr.bf16.mxu0 0
      %748 = vmatpush2.bf16.msra.mxu0 0
      %749 = vmatprep.subr.bf16.mxu0 0
      %750 = vmatpush2.bf16.msra.mxu0 0
      %751 = vmatprep.subr.bf16.mxu0 0
      %752 = vmatpush2.bf16.msra.mxu0 0
      %753 = vmatprep.mubr.bf16.mxu0 0
      %754 = vmatmul.mubr.bf16.gmra.mxu0 %v641
      %v755 = vpop.f32.mrf.mxu0
      %v756 = vadd.f32 0.0, %v755
      %v757 = vpop.f32.mrf.mxu0
      %v758 = vpop.f32.mrf.mxu0
      %v759 = vadd.f32 0.0, %v758
      %v760 = vpop.f32.mrf.mxu0
      %761 = vmatprep.mubr.bf16.mxu0 0
      %762 = vmatmul.mubr.bf16.gmra.mxu0 %v642
      %v763 = vpop.f32.mrf.mxu0
      %v764 = vadd.f32 0.0, %v763
      %v765 = vpop.f32.mrf.mxu0
      %v766 = vpop.f32.mrf.mxu0
      %v767 = vadd.f32 0.0, %v766
      %v768 = vpop.f32.mrf.mxu0
      %769 = vmatprep.mubr.bf16.mxu0 0
      %770 = vmatmul.mubr.bf16.gmra.mxu0 %v643
      %v771 = vpop.f32.mrf.mxu0
      %v772 = vadd.f32 0.0, %v771
      %v773 = vpop.f32.mrf.mxu0
      %v774 = vpop.f32.mrf.mxu0
      %v775 = vadd.f32 0.0, %v774
      %v776 = vpop.f32.mrf.mxu0
      %777 = vmatprep.mubr.bf16.mxu0 0
      %778 = vmatmul.mubr.bf16.gmra.mxu0 %v644
      %v779 = vpop.f32.mrf.mxu0
      %v780 = vadd.f32 0.0, %v779
      %v781 = vpop.f32.mrf.mxu0
      %v782 = vpop.f32.mrf.mxu0
      %v783 = vadd.f32 0.0, %v782
      %v784 = vpop.f32.mrf.mxu0
      %785 = vmatprep.mubr.bf16.mxu0 0
      %786 = vmatmul.mubr.bf16.gmra.mxu0 %v645
      %v787 = vpop.f32.mrf.mxu0
      %v788 = vadd.f32 0.0, %v787
      %v789 = vpop.f32.mrf.mxu0
      %v790 = vpop.f32.mrf.mxu0
      %v791 = vadd.f32 0.0, %v790
      %v792 = vpop.f32.mrf.mxu0
      %793 = vmatprep.mubr.bf16.mxu0 0
      %794 = vmatmul.mubr.bf16.gmra.mxu0 %v646
      %v795 = vpop.f32.mrf.mxu0
      %v796 = vadd.f32 0.0, %v795
      %v797 = vpop.f32.mrf.mxu0
      %v798 = vpop.f32.mrf.mxu0
      %v799 = vadd.f32 0.0, %v798
      %v800 = vpop.f32.mrf.mxu0
      %801 = vmatprep.mubr.bf16.mxu0 0
      %802 = vmatmul.mubr.bf16.gmra.mxu0 %v647
      %v803 = vpop.f32.mrf.mxu0
      %v804 = vadd.f32 0.0, %v803
      %v805 = vpop.f32.mrf.mxu0
      %v806 = vpop.f32.mrf.mxu0
      %v807 = vadd.f32 0.0, %v806
      %v808 = vpop.f32.mrf.mxu0
      %809 = vmatprep.mubr.bf16.mxu0 0
      %810 = vmatmul.mubr.bf16.gmra.mxu0 %v648
      %v811 = vpop.f32.mrf.mxu0
      %v812 = vadd.f32 0.0, %v811
      %v813 = vpop.f32.mrf.mxu0
      %v814 = vpop.f32.mrf.mxu0
      %v815 = vadd.f32 0.0, %v814
      %v816 = vpop.f32.mrf.mxu0
      %817 = vmatprep.mubr.bf16.mxu0 0
      %818 = vmatmul.mubr.bf16.gmra.mxu0 %v649
      %v819 = vpop.f32.mrf.mxu0
      %v820 = vadd.f32 0.0, %v819
      %v821 = vpop.f32.mrf.mxu0
      %v822 = vpop.f32.mrf.mxu0
      %v823 = vadd.f32 0.0, %v822
      %v824 = vpop.f32.mrf.mxu0
      %825 = vmatprep.mubr.bf16.mxu0 0
      %826 = vmatmul.mubr.bf16.gmra.mxu0 %v650
      %v827 = vpop.f32.mrf.mxu0
      %v828 = vadd.f32 0.0, %v827
      %v829 = vpop.f32.mrf.mxu0
      %v830 = vpop.f32.mrf.mxu0
      %v831 = vadd.f32 0.0, %v830
      %v832 = vpop.f32.mrf.mxu0
      %833 = vmatprep.mubr.bf16.mxu0 0
      %834 = vmatmul.mubr.bf16.gmra.mxu0 %v651
      %v835 = vpop.f32.mrf.mxu0
      %v836 = vadd.f32 0.0, %v835
      %v837 = vpop.f32.mrf.mxu0
      %v838 = vpop.f32.mrf.mxu0
      %v839 = vadd.f32 0.0, %v838
      %v840 = vpop.f32.mrf.mxu0
      %841 = vmatprep.mubr.bf16.mxu0 0
      %842 = vmatmul.mubr.bf16.gmra.mxu0 %v652
      %v843 = vpop.f32.mrf.mxu0
      %v844 = vadd.f32 0.0, %v843
      %v845 = vpop.f32.mrf.mxu0
      %v846 = vpop.f32.mrf.mxu0
      %v847 = vadd.f32 0.0, %v846
      %v848 = vpop.f32.mrf.mxu0
      %849 = vmatprep.mubr.bf16.mxu0 0
      %850 = vmatmul.mubr.bf16.gmra.mxu0 %v653
      %v851 = vpop.f32.mrf.mxu0
      %v852 = vadd.f32 0.0, %v851
      %v853 = vpop.f32.mrf.mxu0
      %v854 = vpop.f32.mrf.mxu0
      %v855 = vadd.f32 0.0, %v854
      %v856 = vpop.f32.mrf.mxu0
      %857 = vmatprep.mubr.bf16.mxu0 0
      %858 = vmatmul.mubr.bf16.gmra.mxu0 %v654
      %v859 = vpop.f32.mrf.mxu0
      %v860 = vadd.f32 0.0, %v859
      %v861 = vpop.f32.mrf.mxu0
      %v862 = vpop.f32.mrf.mxu0
      %v863 = vadd.f32 0.0, %v862
      %v864 = vpop.f32.mrf.mxu0
      %865 = vmatprep.mubr.bf16.mxu0 0
      %866 = vmatmul.mubr.bf16.gmra.mxu0 %v655
      %v867 = vpop.f32.mrf.mxu0
      %v868 = vadd.f32 0.0, %v867
      %v869 = vpop.f32.mrf.mxu0
      %v870 = vpop.f32.mrf.mxu0
      %v871 = vadd.f32 0.0, %v870
      %v872 = vpop.f32.mrf.mxu0
      %873 = vmatprep.mubr.bf16.mxu0 0
      %874 = vmatmul.mubr.bf16.gmra.mxu0 %v656
      %v875 = vpop.f32.mrf.mxu0
      %v876 = vadd.f32 0.0, %v875
      %v877 = vpop.f32.mrf.mxu0
      %v878 = vpop.f32.mrf.mxu0
      %v879 = vadd.f32 0.0, %v878
      %v880 = vpop.f32.mrf.mxu0
      %881 = vdwg.mxu0
      %882 = vst.msk [vmem:[%s230] sm:$0xff] %vm297, %v756
      %883 = vst.msk [vmem:[%s230 + $0x8] sm:$0xff] %vm297, %v759
      %884 = vst.msk [vmem:[%s230 + $0x10] sm:$0xff] %vm297, %v764
      %885 = vst.msk [vmem:[%s230 + $0x18] sm:$0xff] %vm297, %v767
      %886 = vst.msk [vmem:[%s230 + $0x20] sm:$0xff] %vm297, %v772
      %887 = vst.msk [vmem:[%s230 + $0x28] sm:$0xff] %vm297, %v775
      %888 = vst.msk [vmem:[%s230 + $0x30] sm:$0xff] %vm297, %v780
      %889 = vst.msk [vmem:[%s230 + $0x38] sm:$0xff] %vm297, %v783
      %890 = vst.msk [vmem:[%s230 + $0x40] sm:$0xff] %vm297, %v788
      %891 = vst.msk [vmem:[%s230 + $0x48] sm:$0xff] %vm297, %v791
      %892 = vst.msk [vmem:[%s230 + $0x50] sm:$0xff] %vm297, %v796
      %893 = vst.msk [vmem:[%s230 + $0x58] sm:$0xff] %vm297, %v799
      %894 = vst.msk [vmem:[%s230 + $0x60] sm:$0xff] %vm297, %v804
      %895 = vst.msk [vmem:[%s230 + $0x68] sm:$0xff] %vm297, %v807
      %896 = vst.msk [vmem:[%s230 + $0x70] sm:$0xff] %vm297, %v812
      %897 = vst.msk [vmem:[%s230 + $0x78] sm:$0xff] %vm297, %v815
      %898 = vst.msk [vmem:[%s230 + $0x80] sm:$0xff] %vm297, %v820
      %899 = vst.msk [vmem:[%s230 + $0x88] sm:$0xff] %vm297, %v823
      %900 = vst.msk [vmem:[%s230 + $0x90] sm:$0xff] %vm297, %v828
      %901 = vst.msk [vmem:[%s230 + $0x98] sm:$0xff] %vm297, %v831
      %902 = vst.msk [vmem:[%s230 + $0xa0] sm:$0xff] %vm297, %v836
      %903 = vst.msk [vmem:[%s230 + $0xa8] sm:$0xff] %vm297, %v839
      %904 = vst.msk [vmem:[%s230 + $0xb0] sm:$0xff] %vm297, %v844
      %905 = vst.msk [vmem:[%s230 + $0xb8] sm:$0xff] %vm297, %v847
      %906 = vst.msk [vmem:[%s230 + $0xc0] sm:$0xff] %vm297, %v852
      %907 = vst.msk [vmem:[%s230 + $0xc8] sm:$0xff] %vm297, %v855
      %908 = vst.msk [vmem:[%s230 + $0xd0] sm:$0xff] %vm297, %v860
      %909 = vst.msk [vmem:[%s230 + $0xd8] sm:$0xff] %vm297, %v863
      %910 = vst.msk [vmem:[%s230 + $0xe0] sm:$0xff] %vm297, %v868
      %911 = vst.msk [vmem:[%s230 + $0xe8] sm:$0xff] %vm297, %v871
      %912 = vst.msk [vmem:[%s230 + $0xf0] sm:$0xff] %vm297, %v876
      %913 = vst.msk [vmem:[%s230 + $0xf8] sm:$0xff] %vm297, %v879
      %s914 = smul.u32 32, %s20
      %p915 = scmp.lt.s32.totalorder %s914, 63
      %s916 = scalar_select %p915, %s914, 63
      %s917 = smul.addr %s916, 8
      %s918 = scalar_lea.vmem %s5, %s917
      // Predicated region
      $region41: #{tpu_custom_call.1} parent=39 // pred_check
        %p919 = pneg %p148
      $region42: #{tpu_custom_call.1} parent=39 // pred_check_branch
        %921 = sbr.rel (%p919) target = $region44
      $region43: #{tpu_custom_call.1} parent=39 // pred_region
        %s922 = smul.u32 32, %s20
      $region44: #{tpu_custom_call.1} parent=39 // pred_fallthru
        _
    $region40: #{tpu_custom_call.1} parent=5 // pred_fallthru
      _
    %p923 = scmp.le.s32.totalorder 2, %s15
    // Predicated region
    $region45: #{tpu_custom_call.1} parent=5 // pred_check
      %p924 = pneg %p923
    $region46: #{tpu_custom_call.1} parent=5 // pred_check_branch
      %926 = sbr.rel (%p924) target = $region48
    $region47: #{tpu_custom_call.1} parent=5 // pred_region
      %s927 = ssub.s32 %s15, 2
      // Predicated region
      $region49: #{tpu_custom_call.1} parent=47 // pred_check
        %p928 = pneg %p154
      $region50: #{tpu_custom_call.1} parent=47 // pred_check_branch
        %930 = sbr.rel (%p928) target = $region52
      $region51: #{tpu_custom_call.1} parent=47 // pred_region
        %s931 = smul.u32 32, %s21
        %p932 = scmp.lt.s32.totalorder %s931, 63
        %s933 = scalar_select %p932, %s931, 63
        %s934 = smul.addr %s933, 8
        %s935 = scalar_lea.vmem %s5, %s934
      $region52: #{tpu_custom_call.1} parent=47 // pred_fallthru
        _
    $region48: #{tpu_custom_call.1} parent=5 // pred_fallthru
      _
  $region6: #{tpu_custom_call.1} parent=0 // loop_footer
    %s19 = sadd.s32 1, %s15
  $region7: #{tpu_custom_call.1} parent=0 // loop_footer_branch
    %14 = sbr.rel target = $region3
  $region8: #{tpu_custom_call.1} parent=0 // loop_exit
    _

</llo_original>
